<compile_context>
chip_gen: v5e
topology: v5e:2x2
jax: 0.10.0
libtpu: 0.0.40
codegen_flags: <defaults>
</compile_context>

<pallas_src>
import functools

import jax
import jax.numpy as jnp
from jax.experimental import pallas as pl
from jax.experimental.pallas import tpu as pltpu

_EPS = 1e-6
_LANES = 128


def _dice_partial_kernel(x_ref, t_ref, inter_ref, denom_ref, *,
                         normalization, c, block_rows, m_total, need_mask):
    m_i = pl.program_id(1)

    # Zero this sample's lane-dense accumulators at the start of its m sweep.
    # (Output blocks are indexed only by n, so they stay resident across m.)
    @pl.when(m_i == 0)
    def _():
        inter_ref[...] = jnp.zeros_like(inter_ref)
        denom_ref[...] = jnp.zeros_like(denom_ref)

    x = x_ref[0].astype(jnp.float32)            # (C, block_rows, 128)
    t = t_ref[0].astype(jnp.float32)

    if normalization == "sigmoid":
        # exp + approx reciprocal both go to the EUP slot (VPU stays free).
        e = jnp.exp(-x)
        p = pl.reciprocal(1.0 + e, approx=True)
    elif normalization == "softmax":
        x_max = jnp.max(x, axis=0, keepdims=True)
        ex = jnp.exp(x - x_max)
        p = ex * pl.reciprocal(jnp.sum(ex, axis=0, keepdims=True), approx=True)
    else:                                       # 'None'
        p = x

    if need_mask:
        # Mask elements past the true end of the flattened batch*spatial axis
        # (lane padding and/or partial last row-block). Two selects on p and t.
        row = jax.lax.broadcasted_iota(jnp.int32, (c, block_rows, _LANES), 1)
        lane = jax.lax.broadcasted_iota(jnp.int32, (c, block_rows, _LANES), 2)
        flat = (m_i * block_rows + row) * _LANES + lane
        valid = flat < m_total
        p = jnp.where(valid, p, 0.0)
        t = jnp.where(valid, t, 0.0)

    # Lane-dense partial accumulation: reduce only across the row axis.
    inter_ref[0] += jnp.sum(p * t, axis=1)              # (C, 128)
    denom_ref[0] += jnp.sum(p * p + t * t, axis=1)      # (C, 128)


def aice_dice_loss(output, target, *, normalization="sigmoid", weight=None,
                   eps=_EPS):
    """output: (N, C, *spatial) logits; target: same shape. Returns scalar loss."""
    assert normalization in ("sigmoid", "softmax", "None")
    # TODO(synk): optional per-channel `weight` buffer is not wired into the kernel.
    assert weight is None, "weight buffer not supported in this kernel"
    assert output.shape == target.shape

    n, c = output.shape[0], output.shape[1]
    m = 1
    for d in output.shape[2:]:
        m *= d

    x = output.reshape(n, c, m)
    t = target.reshape(n, c, m)

    # Pad the flattened axis up to a multiple of 128 lanes if needed. Padded
    # elements are masked out inside the kernel, so sigmoid(0)=0.5 never leaks
    # into the denominator.
    m_pad = ((m + _LANES - 1) // _LANES) * _LANES
    if m_pad != m:
        x = jnp.pad(x, ((0, 0), (0, 0), (0, m_pad - m)))
        t = jnp.pad(t, ((0, 0), (0, 0), (0, m_pad - m)))
    r = m_pad // _LANES

    # Sublane-dense layout: (N, C, R, 128) keeps every vreg full even when C < 8.
    x = x.reshape(n, c, r, _LANES)
    t = t.reshape(n, c, r, _LANES)

    # ---- byte-targeted tile sizing with per-generation VMEM caps ------------
    try:
        vmem_bytes = pltpu.get_tpu_info().vmem_capacity_bytes
    except Exception:
        vmem_bytes = 64 << 20          # conservative (v7x-like) fallback
    pair_row_bytes = c * _LANES * (x.dtype.itemsize + t.dtype.itemsize)
    # Budget for one (x, t) tile pair; double-buffering doubles the footprint,
    # so keep it well under half the scoped VMEM limit we request below.
    pair_budget = min(16 << 20, vmem_bytes // 8)
    block_rows = max(8, (pair_budget // pair_row_bytes) // 8 * 8)
    if block_rows >= r:
        block_rows = r                 # full axis (allowed even if not multiple of 8)
    grid = (n, pl.cdiv(r, block_rows))

    need_mask = (m_pad != m) or (r % block_rows != 0)

    kernel = functools.partial(
        _dice_partial_kernel,
        normalization=normalization, c=c, block_rows=block_rows,
        m_total=m, need_mask=need_mask,
    )

    io_bytes = n * c * m_pad * (x.dtype.itemsize + t.dtype.itemsize)
    cost = pl.CostEstimate(
        flops=6 * n * c * m_pad,
        transcendentals=(n * c * m_pad) if normalization != "None" else 0,
        bytes_accessed=io_bytes + 2 * n * c * _LANES * 4,
    )

    inter_out, denom_out = pl.pallas_call(
        kernel,
        out_shape=(
            jax.ShapeDtypeStruct((n, c, _LANES), jnp.float32),
            jax.ShapeDtypeStruct((n, c, _LANES), jnp.float32),
        ),
        grid_spec=pltpu.PrefetchScalarGridSpec(
            num_scalar_prefetch=0,
            grid=grid,
            in_specs=[
                pl.BlockSpec((1, c, block_rows, _LANES), lambda i, j: (i, 0, j, 0)),
                pl.BlockSpec((1, c, block_rows, _LANES), lambda i, j: (i, 0, j, 0)),
            ],
            out_specs=(
                pl.BlockSpec((1, c, _LANES), lambda i, j: (i, 0, 0)),
                pl.BlockSpec((1, c, _LANES), lambda i, j: (i, 0, 0)),
            ),
        ),
        compiler_params=pltpu.CompilerParams(
            dimension_semantics=("parallel", "arbitrary"),
            vmem_limit_bytes=int(min(vmem_bytes // 2, 64 << 20)),
        ),
        cost_estimate=cost,
    )(x, t)

    # Tiny epilogue in JAX: cross-batch + cross-lane reduce, dice, 1 - mean.
    intersect = jnp.sum(inter_out, axis=(0, 2))            # (C,)
    denom = jnp.sum(denom_out, axis=(0, 2))                # (C,)
    dice = 2.0 * intersect / jnp.maximum(denom, eps)
    return 1.0 - jnp.mean(dice)


def _reference(output, target, normalization="sigmoid", eps=_EPS):
    x = output.astype(jnp.float32)
    if normalization == "sigmoid":
        p = jax.nn.sigmoid(x)
    elif normalization == "softmax":
        p = jax.nn.softmax(x, axis=1)
    else:
        p = x
    t = target.astype(jnp.float32)
    c = output.shape[1]
    pf = jnp.moveaxis(p, 1, 0).reshape(c, -1)
    tf = jnp.moveaxis(t, 1, 0).reshape(c, -1)
    intersect = jnp.sum(pf * tf, axis=-1)
    denom = jnp.sum(pf * pf, axis=-1) + jnp.sum(tf * tf, axis=-1)
    dice = 2.0 * intersect / jnp.maximum(denom, eps)
    return 1.0 - jnp.mean(dice)


if __name__ == "__main__":
    key = jax.random.PRNGKey(0)
    k1, k2 = jax.random.split(key)

    N, C, H, W = 2, 4, 16, 16
    logits = jax.random.normal(k1, (N, C, H, W), dtype=jnp.float32)
    target = (jax.random.uniform(k2, (N, C, H, W)) > 0.5).astype(jnp.float32)

    out = aice_dice_loss(logits, target, normalization="sigmoid")
    jax.block_until_ready(out)

    ref = _reference(logits, target, normalization="sigmoid")
    # Approx-reciprocal sigmoid introduces a tiny (<~1e-3) relative error.
    assert jnp.allclose(out, ref, rtol=5e-3, atol=5e-3), (out, ref)

    print("KERNEL_OK")
</pallas_src>

<mosaic_0001>
module attributes {stable_mosaic.version = 11 : i64} {
  func.func @_dice_partial_kernel(%arg0: i32, %arg1: i32, %arg2: memref<1x4x2x128xf32, #tpu.memory_space<vmem>>, %arg3: memref<1x4x2x128xf32, #tpu.memory_space<vmem>>, %arg4: memref<1x4x128xf32, #tpu.memory_space<vmem>>, %arg5: memref<1x4x128xf32, #tpu.memory_space<vmem>>) attributes {dimension_semantics = [#tpu.dimension_semantics<parallel>, #tpu.dimension_semantics<arbitrary>], iteration_bounds = array<i64: 2, 1>, scalar_prefetch = 0 : i64, scratch_operands = 0 : i64, tpu.core_type = #tpu.core_type<tc>, window_params = [{transform_indices = @transform_0, window_bounds = array<i64: 1, 4, 2, 128>}, {transform_indices = @transform_1, window_bounds = array<i64: 1, 4, 2, 128>}, {transform_indices = @transform_2, window_bounds = array<i64: 1, 4, 128>}, {transform_indices = @transform_3, window_bounds = array<i64: 1, 4, 128>}]} {
    %c0_i32 = arith.constant 0 : i32
    %0 = arith.cmpi eq, %arg1, %c0_i32 : i32
    %1 = arith.extui %0 : i1 to i32
    %c0_i32_0 = arith.constant 0 : i32
    %2 = arith.cmpi ne, %1, %c0_i32_0 : i32
    scf.if %2 {
      %cst_23 = arith.constant 0.000000e+00 : f32
      %31 = vector.broadcast %cst_23 : f32 to vector<1x4x128xf32>
      %c0_24 = arith.constant 0 : index
      %c0_25 = arith.constant 0 : index
      %c0_26 = arith.constant 0 : index
      %32 = vector.load %arg4[%c0_24, %c0_25, %c0_26] : memref<1x4x128xf32, #tpu.memory_space<vmem>>, vector<1x4x128xf32>
      tpu.vector_store %arg4[%c0_24, %c0_25, %c0_26], %31 {strides = array<i32>} : memref<1x4x128xf32, #tpu.memory_space<vmem>>, vector<1x4x128xf32>,
      %cst_27 = arith.constant 0.000000e+00 : f32
      %33 = vector.broadcast %cst_27 : f32 to vector<1x4x128xf32>
      %c0_28 = arith.constant 0 : index
      %c0_29 = arith.constant 0 : index
      %c0_30 = arith.constant 0 : index
      %34 = vector.load %arg5[%c0_28, %c0_29, %c0_30] : memref<1x4x128xf32, #tpu.memory_space<vmem>>, vector<1x4x128xf32>
      tpu.vector_store %arg5[%c0_28, %c0_29, %c0_30], %33 {strides = array<i32>} : memref<1x4x128xf32, #tpu.memory_space<vmem>>, vector<1x4x128xf32>,
    } else {
    }
    %c0 = arith.constant 0 : index
    %c0_1 = arith.constant 0 : index
    %c0_2 = arith.constant 0 : index
    %c0_3 = arith.constant 0 : index
    %3 = vector.load %arg2[%c0, %c0_1, %c0_2, %c0_3] : memref<1x4x2x128xf32, #tpu.memory_space<vmem>>, vector<1x4x2x128xf32>
    %4 = vector.shape_cast %3 : vector<1x4x2x128xf32> to vector<4x2x128xf32>
    %c0_4 = arith.constant 0 : index
    %c0_5 = arith.constant 0 : index
    %c0_6 = arith.constant 0 : index
    %c0_7 = arith.constant 0 : index
    %5 = vector.load %arg3[%c0_4, %c0_5, %c0_6, %c0_7] : memref<1x4x2x128xf32, #tpu.memory_space<vmem>>, vector<1x4x2x128xf32>
    %6 = vector.shape_cast %5 : vector<1x4x2x128xf32> to vector<4x2x128xf32>
    %cst = arith.constant 0.000000e+00 : f32
    %7 = vector.broadcast %cst : f32 to vector<4x2x128xf32>
    %8 = arith.subf %7, %4 : vector<4x2x128xf32>
    %9 = math.exp %8 : vector<4x2x128xf32>
    %cst_8 = arith.constant 1.000000e+00 : f32
    %10 = vector.broadcast %cst_8 : f32 to vector<4x2x128xf32>
    %11 = arith.addf %10, %9 : vector<4x2x128xf32>
    %12 = tpu.reciprocal %11 {approx = true} : vector<4x2x128xf32> -> vector<4x2x128xf32>
    %c0_9 = arith.constant 0 : index
    %c0_10 = arith.constant 0 : index
    %c0_11 = arith.constant 0 : index
    %13 = vector.load %arg4[%c0_9, %c0_10, %c0_11] : memref<1x4x128xf32, #tpu.memory_space<vmem>>, vector<1x4x128xf32>
    %14 = vector.shape_cast %13 : vector<1x4x128xf32> to vector<4x128xf32>
    %15 = arith.mulf %12, %6 : vector<4x2x128xf32>
    %cst_12 = arith.constant dense<0.000000e+00> : vector<4x128xf32>
    %16 = vector.multi_reduction <add>, %15, %cst_12 [1] : vector<4x2x128xf32> to vector<4x128xf32>
    %17 = arith.addf %14, %16 : vector<4x128xf32>
    %c0_13 = arith.constant 0 : index
    %c0_14 = arith.constant 0 : index
    %c0_15 = arith.constant 0 : index
    %18 = vector.load %arg4[%c0_13, %c0_14, %c0_15] : memref<1x4x128xf32, #tpu.memory_space<vmem>>, vector<1x4x128xf32>
    %19 = vector.shape_cast %18 : vector<1x4x128xf32> to vector<4x128xf32>
    %20 = vector.shape_cast %17 : vector<4x128xf32> to vector<1x4x128xf32>
    tpu.vector_store %arg4[%c0_13, %c0_14, %c0_15], %20 {strides = array<i32>} : memref<1x4x128xf32, #tpu.memory_space<vmem>>, vector<1x4x128xf32>,
    %c0_16 = arith.constant 0 : index
    %c0_17 = arith.constant 0 : index
    %c0_18 = arith.constant 0 : index
    %21 = vector.load %arg5[%c0_16, %c0_17, %c0_18] : memref<1x4x128xf32, #tpu.memory_space<vmem>>, vector<1x4x128xf32>
    %22 = vector.shape_cast %21 : vector<1x4x128xf32> to vector<4x128xf32>
    %23 = arith.mulf %12, %12 : vector<4x2x128xf32>
    %24 = arith.mulf %6, %6 : vector<4x2x128xf32>
    %25 = arith.addf %23, %24 : vector<4x2x128xf32>
    %cst_19 = arith.constant dense<0.000000e+00> : vector<4x128xf32>
    %26 = vector.multi_reduction <add>, %25, %cst_19 [1] : vector<4x2x128xf32> to vector<4x128xf32>
    %27 = arith.addf %22, %26 : vector<4x128xf32>
    %c0_20 = arith.constant 0 : index
    %c0_21 = arith.constant 0 : index
    %c0_22 = arith.constant 0 : index
    %28 = vector.load %arg5[%c0_20, %c0_21, %c0_22] : memref<1x4x128xf32, #tpu.memory_space<vmem>>, vector<1x4x128xf32>
    %29 = vector.shape_cast %28 : vector<1x4x128xf32> to vector<4x128xf32>
    %30 = vector.shape_cast %27 : vector<4x128xf32> to vector<1x4x128xf32>
    tpu.vector_store %arg5[%c0_20, %c0_21, %c0_22], %30 {strides = array<i32>} : memref<1x4x128xf32, #tpu.memory_space<vmem>>, vector<1x4x128xf32>,
    return
  }
  func.func @transform_0(%arg0: i32, %arg1: i32) -> (i32, i32, i32, i32) {
    %c0_i32 = arith.constant 0 : i32
    %c0_i32_0 = arith.constant 0 : i32
    %c0_i32_1 = arith.constant 0 : i32
    return %arg0, %c0_i32, %arg1, %c0_i32_0 : i32, i32, i32, i32
  }
  func.func @transform_1(%arg0: i32, %arg1: i32) -> (i32, i32, i32, i32) {
    %c0_i32 = arith.constant 0 : i32
    %c0_i32_0 = arith.constant 0 : i32
    %c0_i32_1 = arith.constant 0 : i32
    return %arg0, %c0_i32, %arg1, %c0_i32_0 : i32, i32, i32, i32
  }
  func.func @transform_2(%arg0: i32, %arg1: i32) -> (i32, i32, i32) {
    %c0_i32 = arith.constant 0 : i32
    %c0_i32_0 = arith.constant 0 : i32
    %c0_i32_1 = arith.constant 0 : i32
    return %arg0, %c0_i32, %c0_i32_0 : i32, i32, i32
  }
  func.func @transform_3(%arg0: i32, %arg1: i32) -> (i32, i32, i32) {
    %c0_i32 = arith.constant 0 : i32
    %c0_i32_0 = arith.constant 0 : i32
    %c0_i32_1 = arith.constant 0 : i32
    return %arg0, %c0_i32, %c0_i32_0 : i32, i32, i32
  }
}

</mosaic_0001>

<llo_original>
// kernel: tpu_custom_call.1
$region0: #{tpu_custom_call.1}
  #allocation0 [shape = 'u32[]', space=smem, size = 0x4, offset = 0x4, fixed_abs, tag = 'smem constant byte address 0x4 - core index']
  #allocation1 [shape = 'u32[72,128]{1,0:T(1,128)}', space=vmem, size = 0x9000, scoped, tag = 'internal scratch']
  %s0 = inlined_call_operand.hbm [shape: f32[2,4,2,128], index: 0, kind: input, shape index: {}]
  %s1 = inlined_call_operand.hbm [shape: f32[2,4,2,128], index: 1, kind: input, shape index: {}]
  %s2 = inlined_call_operand.hbm [shape: f32[2,4,128], index: 2, kind: output, shape index: {0}]
  %s3 = inlined_call_operand.hbm [shape: f32[2,4,128], index: 3, kind: output, shape index: {1}]
  %4 = xla_tuple %s2, %s3
  %s5 = sld [smem:[#allocation0]]
  $region61: #{tpu_custom_call.1} parent=0
    _
  %s7 = ssub.s32 1, %s5
  %s8 = scalar_select 0, %s7, %s5
  $region1: #{tpu_custom_call.1} parent=0
    #allocation2 [shape = 'u8[8192]{0}', space=vmem, size = 0x2000, scoped, tag = 'input window, operand 0']
    #allocation3 [shape = 's32[2]{0}', space=sflag, size = 0x8, scoped, tag = 'scoped memory for tpu_custom_call.1']
    #allocation4 [shape = 's32[2]{0}', space=sflag, size = 0x8, scoped, tag = 'scoped memory for tpu_custom_call.1']
    #allocation5 [shape = 'u8[8192]{0}', space=vmem, size = 0x2000, scoped, tag = 'input window, operand 1']
    #allocation6 [shape = 's32[2]{0}', space=sflag, size = 0x8, scoped, tag = 'scoped memory for tpu_custom_call.1']
    #allocation7 [shape = 'u8[4096]{0}', space=vmem, size = 0x1000, scoped, tag = 'output window, operand 0']
    #allocation8 [shape = 'u8[4096]{0}', space=vmem, size = 0x1000, scoped, tag = 'output window, operand 1']
    #allocation9 [shape = 's32[2]{0}', space=sflag, size = 0x8, scoped, tag = 'scoped memory for tpu_custom_call.1']
    %9 = vsyncpa [#allocation3], 0
    %s10 = scalar_lea.sflag [#allocation3], 1
    %11 = vsyncpa %s10, 0
    %12 = vsyncpa [#allocation6], 0
    %s13 = scalar_lea.sflag [#allocation6], 1
    %14 = vsyncpa %s13, 0
    %15 = vsyncpa [#allocation4], 0
    %s16 = scalar_lea.sflag [#allocation4], 1
    %17 = vsyncpa %s16, 0
    %18 = vsyncpa [#allocation9], 0
    %s19 = scalar_lea.sflag [#allocation9], 1
    %20 = vsyncpa %s19, 0
    loop: start=0, step=1, limit=4
    $region2: #{tpu_custom_call.1} parent=1 // loop_pre_header
      _
    $region3: #{tpu_custom_call.1} parent=1 // loop_header
      %s22 = sphi 0, %s26
      %p23 = scmp.ge.s32.totalorder %s22, 4
      %s29 = sphi 0, %s41
      %s30 = sphi 0, %s37
      %s31 = sphi 0, %s29
      %s32 = sphi 0, %s30
      %s33 = sphi 0, %s31
      %s34 = sphi 0, %s32
      %s46 = sphi 0, %s48
      %s49 = sphi 0, %s46
      %s50 = sphi 0, %s49
      %s66 = sphi 0, %s50
      %s74 = sphi 0, %s76
      %s77 = sphi 0, %s74
      %s78 = sphi 0, %s77
      %s94 = sphi 0, %s78
      %s100 = sphi 0, %s102
      %s103 = sphi 0, %s100
      %s104 = sphi 0, %s103
      %s120 = sphi 0, %s104
      %s126 = sphi 0, %s128
      %s129 = sphi 0, %s126
      %s130 = sphi 0, %s129
      %s146 = sphi 0, %s130
    $region4: #{tpu_custom_call.1} parent=1 // loop_header_branch
      %25 = sbr.rel (%p23) target = $region8
    $region5: #{tpu_custom_call.1} parent=1 // loop_body
      %s27 = ssub.s32 %s22, 1
      %s28 = ssub.s32 %s22, 2
      %s35 = sadd.s32 1, %s30
      %p36 = scmp.ge.s32.totalorder %s35, 1
      %s37 = scalar_select %p36, 0, %s35
      %s38 = sadd.s32 1, %s29
      %s39 = scalar_select %p36, %s38, %s29
      %p40 = scmp.ge.s32.totalorder %s39, 2
      %s41 = scalar_select %p40, 0, %s39
      %s42 = ssub.s32 %s29, %s41
      %s43 = ssub.s32 %s30, %s37
      %s44 = sor.u32 %s42, %s43
      %p45 = scmp.eq.s32.totalorder %s44, 0
      %s47 = sadd.s32 %s46, 1
      %s48 = scalar_select %p45, %s46, %s47
      %p51 = pneg %p45
      %p52 = scmp.eq.s32.totalorder %s22, 1
      %p53 = por %p51, %p52
      %p54 = scmp.ne.s32.totalorder %s46, %s49
      %p55 = scmp.eq.s32.totalorder %s22, 0
      %p56 = por %p54, %p55
      %p57 = scmp.ne.s32.totalorder %s46, %s49
      %p58 = scmp.eq.s32.totalorder %s27, 1
      %p59 = por %p57, %p58
      %p60 = scmp.ne.s32.totalorder %s49, %s50
      %p61 = scmp.eq.s32.totalorder %s27, 0
      %p62 = por %p60, %p61
      %p63 = scmp.ne.s32.totalorder %s49, %s50
      %p64 = scmp.eq.s32.totalorder %s28, 1
      %p65 = por %p63, %p64
      %p67 = scmp.ne.s32.totalorder %s50, %s66
      %p68 = scmp.eq.s32.totalorder %s28, 0
      %p69 = por %p67, %p68
      %s70 = ssub.s32 %s29, %s41
      %s71 = ssub.s32 %s30, %s37
      %s72 = sor.u32 %s70, %s71
      %p73 = scmp.eq.s32.totalorder %s72, 0
      %s75 = sadd.s32 %s74, 1
      %s76 = scalar_select %p73, %s74, %s75
      %p79 = pneg %p73
      %p80 = scmp.eq.s32.totalorder %s22, 1
      %p81 = por %p79, %p80
      %p82 = scmp.ne.s32.totalorder %s74, %s77
      %p83 = scmp.eq.s32.totalorder %s22, 0
      %p84 = por %p82, %p83
      %p85 = scmp.ne.s32.totalorder %s74, %s77
      %p86 = scmp.eq.s32.totalorder %s27, 1
      %p87 = por %p85, %p86
      %p88 = scmp.ne.s32.totalorder %s77, %s78
      %p89 = scmp.eq.s32.totalorder %s27, 0
      %p90 = por %p88, %p89
      %p91 = scmp.ne.s32.totalorder %s77, %s78
      %p92 = scmp.eq.s32.totalorder %s28, 1
      %p93 = por %p91, %p92
      %p95 = scmp.ne.s32.totalorder %s78, %s94
      %p96 = scmp.eq.s32.totalorder %s28, 0
      %p97 = por %p95, %p96
      %s98 = ssub.s32 %s29, %s41
      %p99 = scmp.eq.s32.totalorder %s98, 0
      %s101 = sadd.s32 %s100, 1
      %s102 = scalar_select %p99, %s100, %s101
      %p105 = pneg %p99
      %p106 = scmp.eq.s32.totalorder %s22, 1
      %p107 = por %p105, %p106
      %p108 = scmp.ne.s32.totalorder %s100, %s103
      %p109 = scmp.eq.s32.totalorder %s22, 0
      %p110 = por %p108, %p109
      %p111 = scmp.ne.s32.totalorder %s100, %s103
      %p112 = scmp.eq.s32.totalorder %s27, 1
      %p113 = por %p111, %p112
      %p114 = scmp.ne.s32.totalorder %s103, %s104
      %p115 = scmp.eq.s32.totalorder %s27, 0
      %p116 = por %p114, %p115
      %p117 = scmp.ne.s32.totalorder %s103, %s104
      %p118 = scmp.eq.s32.totalorder %s28, 1
      %p119 = por %p117, %p118
      %p121 = scmp.ne.s32.totalorder %s104, %s120
      %p122 = scmp.eq.s32.totalorder %s28, 0
      %p123 = por %p121, %p122
      %s124 = ssub.s32 %s29, %s41
      %p125 = scmp.eq.s32.totalorder %s124, 0
      %s127 = sadd.s32 %s126, 1
      %s128 = scalar_select %p125, %s126, %s127
      %p131 = pneg %p125
      %p132 = scmp.eq.s32.totalorder %s22, 1
      %p133 = por %p131, %p132
      %p134 = scmp.ne.s32.totalorder %s126, %s129
      %p135 = scmp.eq.s32.totalorder %s22, 0
      %p136 = por %p134, %p135
      %p137 = scmp.ne.s32.totalorder %s126, %s129
      %p138 = scmp.eq.s32.totalorder %s27, 1
      %p139 = por %p137, %p138
      %p140 = scmp.ne.s32.totalorder %s129, %s130
      %p141 = scmp.eq.s32.totalorder %s27, 0
      %p142 = por %p140, %p141
      %p143 = scmp.ne.s32.totalorder %s129, %s130
      %p144 = scmp.eq.s32.totalorder %s28, 1
      %p145 = por %p143, %p144
      %p147 = scmp.ne.s32.totalorder %s130, %s146
      %p148 = scmp.eq.s32.totalorder %s28, 0
      %p149 = por %p147, %p148
      %p150 = scmp.le.s32.totalorder 1, %s22
      %p151 = scmp.lt.s32.totalorder %s22, 3
      %p152 = pnand %p150, %p151
      %p153 = pneg %p152
      // Predicated region
      $region9: #{tpu_custom_call.1} parent=5 // pred_check
        _
      $region10: #{tpu_custom_call.1} parent=5 // pred_check_branch
        %155 = sbr.rel (%p152) target = $region12
      $region11: #{tpu_custom_call.1} parent=5 // pred_region
        %s156 = ssub.s32 %s22, 1
      $region12: #{tpu_custom_call.1} parent=5 // pred_fallthru
        _
      %p157 = scmp.lt.s32.totalorder %s22, 2
      // Predicated region
      $region13: #{tpu_custom_call.1} parent=5 // pred_check
        %p158 = pneg %p157
      $region14: #{tpu_custom_call.1} parent=5 // pred_check_branch
        %160 = sbr.rel (%p158) target = $region16
      $region15: #{tpu_custom_call.1} parent=5 // pred_region
        // Predicated region
        $region17: #{tpu_custom_call.1} parent=15 // pred_check
          %p161 = pneg %p56
        $region18: #{tpu_custom_call.1} parent=15 // pred_check_branch
          %163 = sbr.rel (%p161) target = $region20
        $region19: #{tpu_custom_call.1} parent=15 // pred_region
          %s164 = sand.u32 %s46, 1
          %s165 = scalar_lea.sflag [#allocation3], %s164
          %s166 = sand.u32 %s46, 1
          %s167 = smul.addr %s166, 8
          %s168 = scalar_lea.vmem [#allocation2], %s167
          %170 = vsyncadd %s165, 0
          %s171 = smul.addr %s29, 4
          %s172 = sadd.s32 %s30, %s171
          %s173 = smul.addr %s172, 2
          %s174 = scalar_lea.hbm %s0, %s173
          %s175 = sshll.u32 %s174, 4
          %s176 = int_to_ptr.hbm [resolvable:$true] %s175
          %s177 = sshll.u32 %s168, 4
          %s178 = int_to_ptr.vmem [resolvable:$true] %s177
          %183 = dma.hbm_to_vmem [thread:$0]  %s176, 128, %s178, %s165, 32, 32, 2
        $region20: #{tpu_custom_call.1} parent=15 // pred_fallthru
          _
        // Predicated region
        $region21: #{tpu_custom_call.1} parent=15 // pred_check
          %p184 = pneg %p84
        $region22: #{tpu_custom_call.1} parent=15 // pred_check_branch
          %186 = sbr.rel (%p184) target = $region24
        $region23: #{tpu_custom_call.1} parent=15 // pred_region
          %s187 = sand.u32 %s74, 1
          %s188 = scalar_lea.sflag [#allocation6], %s187
          %s189 = sand.u32 %s74, 1
          %s190 = smul.addr %s189, 8
          %s191 = scalar_lea.vmem [#allocation5], %s190
          %193 = vsyncadd %s188, 0
          %s194 = smul.addr %s29, 4
          %s195 = sadd.s32 %s30, %s194
          %s196 = smul.addr %s195, 2
          %s197 = scalar_lea.hbm %s1, %s196
          %s198 = sshll.u32 %s197, 4
          %s199 = int_to_ptr.hbm [resolvable:$true] %s198
          %s200 = sshll.u32 %s191, 4
          %s201 = int_to_ptr.vmem [resolvable:$true] %s200
          %206 = dma.hbm_to_vmem [thread:$0]  %s199, 128, %s201, %s188, 32, 32, 2
        $region24: #{tpu_custom_call.1} parent=15 // pred_fallthru
          _
      $region16: #{tpu_custom_call.1} parent=5 // pred_fallthru
        _
      %p207 = scmp.le.s32.totalorder 1, %s22
      %p208 = scmp.lt.s32.totalorder %s22, 3
      %p209 = pnand %p207, %p208
      %p210 = pneg %p209
      // Predicated region
      $region25: #{tpu_custom_call.1} parent=5 // pred_check
        _
      $region26: #{tpu_custom_call.1} parent=5 // pred_check_branch
        %212 = sbr.rel (%p209) target = $region28
      $region27: #{tpu_custom_call.1} parent=5 // pred_region
        %s213 = ssub.s32 %s22, 1
        %s214 = sand.u32 %s49, 1
        %s215 = scalar_lea.sflag [#allocation3], %s214
        %s216 = sand.u32 %s49, 1
        %s217 = smul.addr %s216, 8
        %s218 = scalar_lea.vmem [#allocation2], %s217
        // Predicated region
        $region29: #{tpu_custom_call.1} parent=27 // pred_check
          %p219 = pneg %p62
        $region30: #{tpu_custom_call.1} parent=27 // pred_check_branch
          %221 = sbr.rel (%p219) target = $region32
        $region31: #{tpu_custom_call.1} parent=27 // pred_region
          %223 = dma.done %s215, 128
        $region32: #{tpu_custom_call.1} parent=27 // pred_fallthru
          _
        %s224 = sand.u32 %s77, 1
        %s225 = scalar_lea.sflag [#allocation6], %s224
        %s226 = sand.u32 %s77, 1
        %s227 = smul.addr %s226, 8
        %s228 = scalar_lea.vmem [#allocation5], %s227
        // Predicated region
        $region33: #{tpu_custom_call.1} parent=27 // pred_check
          %p229 = pneg %p90
        $region34: #{tpu_custom_call.1} parent=27 // pred_check_branch
          %231 = sbr.rel (%p229) target = $region36
        $region35: #{tpu_custom_call.1} parent=27 // pred_region
          %233 = dma.done %s225, 128
        $region36: #{tpu_custom_call.1} parent=27 // pred_fallthru
          _
        %s234 = sand.u32 %s49, 1
        %s235 = scalar_lea.sflag [#allocation3], %s234
        %s236 = sand.u32 %s49, 1
        %s237 = smul.addr %s236, 8
        %s238 = scalar_lea.vmem [#allocation2], %s237
        %p239 = pneg %p62
        %p240 = pneg %p59
        %s241 = sand.u32 %s77, 1
        %s242 = scalar_lea.sflag [#allocation6], %s241
        %s243 = sand.u32 %s77, 1
        %s244 = smul.addr %s243, 8
        %s245 = scalar_lea.vmem [#allocation5], %s244
        %p246 = pneg %p90
        %p247 = pneg %p87
        %p248 = pneg %p116
        %p249 = pneg %p113
        %s250 = sand.u32 %s103, 1
        %s251 = scalar_lea.sflag [#allocation4], %s250
        %s252 = sand.u32 %s103, 1
        %s253 = smul.addr %s252, 4
        %s254 = scalar_lea.vmem [#allocation7], %s253
        %p255 = pneg %p142
        %p256 = pneg %p139
        %s257 = sand.u32 %s129, 1
        %s258 = scalar_lea.sflag [#allocation9], %s257
        %s259 = sand.u32 %s129, 1
        %s260 = smul.addr %s259, 4
        %s261 = scalar_lea.vmem [#allocation8], %s260
        %p262 = scmp.eq.s32.totalorder %s32, 0
        // Predicated region
        $region37: #{tpu_custom_call.1} parent=27 // pred_check
          %p263 = pneg %p262
        $region38: #{tpu_custom_call.1} parent=27 // pred_check_branch
          %265 = sbr.rel (%p263) target = $region40
        $region39: #{tpu_custom_call.1} parent=27 // pred_region
          %266 = vst [vmem:[%s254] sm:$0xf] 0.0
          %267 = vst [vmem:[%s261] sm:$0xf] 0.0
        $region40: #{tpu_custom_call.1} parent=27 // pred_fallthru
          _
        %v268 = vld [vmem:[%s218] sm:$0x3]
        %v269 = vld [vmem:[%s218 + $0x2] sm:$0x3]
        %v270 = vld [vmem:[%s218 + $0x4] sm:$0x3]
        %v271 = vld [vmem:[%s218 + $0x6] sm:$0x3]
        %v272 = vld [vmem:[%s228] sm:$0x3]
        %v273 = vld [vmem:[%s228 + $0x2] sm:$0x3]
        %v274 = vld [vmem:[%s228 + $0x4] sm:$0x3]
        %v275 = vld [vmem:[%s228 + $0x6] sm:$0x3]
        %v276 = vsub.f32 0.0, %v268
        %v277 = vsub.f32 0.0, %v269
        %v278 = vsub.f32 0.0, %v270
        %v279 = vsub.f32 0.0, %v271
        %v280 = vmul.f32 %v276, 1.442695
        %v281 = vpow.pop %v280
        %v282 = vmul.f32 %v277, 1.442695
        %v283 = vpow.pop %v282
        %v284 = vmul.f32 %v278, 1.442695
        %v285 = vpow.pop %v284
        %v286 = vmul.f32 %v279, 1.442695
        %v287 = vpow.pop %v286
        %v288 = vadd.f32 %v281, 1.0
        %v289 = vadd.f32 %v283, 1.0
        %v290 = vadd.f32 %v285, 1.0
        %v291 = vadd.f32 %v287, 1.0
        %v292 = vrcp.pop %v288
        %v293 = vrcp.pop %v289
        %v294 = vrcp.pop %v290
        %v295 = vrcp.pop %v291
        %v296 = vld [vmem:[%s254] sm:$0xf]
        %v297 = vmul.f32 %v292, %v272
        %v298 = vmul.f32 %v293, %v273
        %v299 = vmul.f32 %v294, %v274
        %v300 = vmul.f32 %v295, %v275
        %vm301 = vcmask 1041408
        %v302 = vsel %vm301, %v297, 0.0
        %v303 = vrot.slane %v302, 4
        %v304 = vadd.f32 %v302, %v303
        %v305 = vrot.slane %v304, 2
        %v306 = vadd.f32 %v304, %v305
        %v307 = vrot.slane %v306, 1
        %v308 = vadd.f32 %v306, %v307
        %v309 = vsel %vm301, %v298, 0.0
        %v310 = vrot.slane %v309, 4
        %v311 = vadd.f32 %v309, %v310
        %v312 = vrot.slane %v311, 2
        %v313 = vadd.f32 %v311, %v312
        %v314 = vrot.slane %v313, 1
        %v315 = vadd.f32 %v313, %v314
        %v316 = vsel %vm301, %v299, 0.0
        %v317 = vrot.slane %v316, 4
        %v318 = vadd.f32 %v316, %v317
        %v319 = vrot.slane %v318, 2
        %v320 = vadd.f32 %v318, %v319
        %v321 = vrot.slane %v320, 1
        %v322 = vadd.f32 %v320, %v321
        %v323 = vsel %vm301, %v300, 0.0
        %v324 = vrot.slane %v323, 4
        %v325 = vadd.f32 %v323, %v324
        %v326 = vrot.slane %v325, 2
        %v327 = vadd.f32 %v325, %v326
        %v328 = vrot.slane %v327, 1
        %v329 = vadd.f32 %v327, %v328
        %vm334 = vcmask 1041409
        %v335 = vsel %vm334, %v315, %v308
        %vm336 = vcmask 1042434
        %v337 = vsel %vm336, %v322, %v335
        %vm338 = vcmask 1043459
        %v339 = vsel %vm338, %v329, %v337
        %v341 = vadd.f32 %v296, %v339
        %342 = vst [vmem:[%s254] sm:$0xf] %v341
        %v343 = vld [vmem:[%s261] sm:$0xf]
        %v344 = vmul.f32 %v292, %v292
        %v345 = vmul.f32 %v293, %v293
        %v346 = vmul.f32 %v294, %v294
        %v347 = vmul.f32 %v295, %v295
        %v348 = vmul.f32 %v272, %v272
        %v349 = vmul.f32 %v273, %v273
        %v350 = vmul.f32 %v274, %v274
        %v351 = vmul.f32 %v275, %v275
        %v352 = vadd.f32 %v344, %v348
        %v353 = vadd.f32 %v345, %v349
        %v354 = vadd.f32 %v346, %v350
        %v355 = vadd.f32 %v347, %v351
        %v356 = vsel %vm301, %v352, 0.0
        %v357 = vrot.slane %v356, 4
        %v358 = vadd.f32 %v356, %v357
        %v359 = vrot.slane %v358, 2
        %v360 = vadd.f32 %v358, %v359
        %v361 = vrot.slane %v360, 1
        %v362 = vadd.f32 %v360, %v361
        %v363 = vsel %vm301, %v353, 0.0
        %v364 = vrot.slane %v363, 4
        %v365 = vadd.f32 %v363, %v364
        %v366 = vrot.slane %v365, 2
        %v367 = vadd.f32 %v365, %v366
        %v368 = vrot.slane %v367, 1
        %v369 = vadd.f32 %v367, %v368
        %v370 = vsel %vm301, %v354, 0.0
        %v371 = vrot.slane %v370, 4
        %v372 = vadd.f32 %v370, %v371
        %v373 = vrot.slane %v372, 2
        %v374 = vadd.f32 %v372, %v373
        %v375 = vrot.slane %v374, 1
        %v376 = vadd.f32 %v374, %v375
        %v377 = vsel %vm301, %v355, 0.0
        %v378 = vrot.slane %v377, 4
        %v379 = vadd.f32 %v377, %v378
        %v380 = vrot.slane %v379, 2
        %v381 = vadd.f32 %v379, %v380
        %v382 = vrot.slane %v381, 1
        %v383 = vadd.f32 %v381, %v382
        %v388 = vsel %vm334, %v369, %v362
        %v389 = vsel %vm336, %v376, %v388
        %v390 = vsel %vm338, %v383, %v389
        %v392 = vadd.f32 %v343, %v390
        %393 = vst [vmem:[%s261] sm:$0xf] %v392
        %s394 = sand.u32 %s103, 1
        %s395 = scalar_lea.sflag [#allocation4], %s394
        %s396 = sand.u32 %s103, 1
        %s397 = smul.addr %s396, 4
        %s398 = scalar_lea.vmem [#allocation7], %s397
        %s399 = sand.u32 %s129, 1
        %s400 = scalar_lea.sflag [#allocation9], %s399
        %s401 = sand.u32 %s129, 1
        %s402 = smul.addr %s401, 4
        %s403 = scalar_lea.vmem [#allocation8], %s402
        // Predicated region
        $region41: #{tpu_custom_call.1} parent=27 // pred_check
          %p404 = pneg %p113
        $region42: #{tpu_custom_call.1} parent=27 // pred_check_branch
          %406 = sbr.rel (%p404) target = $region44
        $region43: #{tpu_custom_call.1} parent=27 // pred_region
          %408 = vsyncadd %s395, 0
          %s409 = smul.addr %s31, 4
          %s410 = scalar_lea.hbm %s2, %s409
          %s412 = sshll.u32 %s398, 4
          %s413 = int_to_ptr.vmem [resolvable:$true] %s412
          %s414 = sshll.u32 %s410, 4
          %s415 = int_to_ptr.hbm [resolvable:$true] %s414
          %417 = dma.vmem_to_hbm [thread:$0]  %s413, 64, %s415, %s395
        $region44: #{tpu_custom_call.1} parent=27 // pred_fallthru
          _
        // Predicated region
        $region45: #{tpu_custom_call.1} parent=27 // pred_check
          %p418 = pneg %p139
        $region46: #{tpu_custom_call.1} parent=27 // pred_check_branch
          %420 = sbr.rel (%p418) target = $region48
        $region47: #{tpu_custom_call.1} parent=27 // pred_region
          %422 = vsyncadd %s400, 0
          %s423 = smul.addr %s31, 4
          %s424 = scalar_lea.hbm %s3, %s423
          %s426 = sshll.u32 %s403, 4
          %s427 = int_to_ptr.vmem [resolvable:$true] %s426
          %s428 = sshll.u32 %s424, 4
          %s429 = int_to_ptr.hbm [resolvable:$true] %s428
          %431 = dma.vmem_to_hbm [thread:$0]  %s427, 64, %s429, %s400
        $region48: #{tpu_custom_call.1} parent=27 // pred_fallthru
          _
      $region28: #{tpu_custom_call.1} parent=5 // pred_fallthru
        _
      %p432 = scmp.le.s32.totalorder 2, %s22
      // Predicated region
      $region49: #{tpu_custom_call.1} parent=5 // pred_check
        %p433 = pneg %p432
      $region50: #{tpu_custom_call.1} parent=5 // pred_check_branch
        %435 = sbr.rel (%p433) target = $region52
      $region51: #{tpu_custom_call.1} parent=5 // pred_region
        %s436 = ssub.s32 %s22, 2
        // Predicated region
        $region53: #{tpu_custom_call.1} parent=51 // pred_check
          %p437 = pneg %p119
        $region54: #{tpu_custom_call.1} parent=51 // pred_check_branch
          %439 = sbr.rel (%p437) target = $region56
        $region55: #{tpu_custom_call.1} parent=51 // pred_region
          %s440 = sand.u32 %s104, 1
          %s441 = scalar_lea.sflag [#allocation4], %s440
          %s442 = sand.u32 %s104, 1
          %s443 = smul.addr %s442, 4
          %s444 = scalar_lea.vmem [#allocation7], %s443
          %446 = dma.done %s441, 64
        $region56: #{tpu_custom_call.1} parent=51 // pred_fallthru
          _
        // Predicated region
        $region57: #{tpu_custom_call.1} parent=51 // pred_check
          %p447 = pneg %p145
        $region58: #{tpu_custom_call.1} parent=51 // pred_check_branch
          %449 = sbr.rel (%p447) target = $region60
        $region59: #{tpu_custom_call.1} parent=51 // pred_region
          %s450 = sand.u32 %s130, 1
          %s451 = scalar_lea.sflag [#allocation9], %s450
          %s452 = sand.u32 %s130, 1
          %s453 = smul.addr %s452, 4
          %s454 = scalar_lea.vmem [#allocation8], %s453
          %456 = dma.done %s451, 64
        $region60: #{tpu_custom_call.1} parent=51 // pred_fallthru
          _
      $region52: #{tpu_custom_call.1} parent=5 // pred_fallthru
        _
    $region6: #{tpu_custom_call.1} parent=1 // loop_footer
      %s26 = sadd.s32 1, %s22
    $region7: #{tpu_custom_call.1} parent=1 // loop_footer_branch
      %21 = sbr.rel target = $region3
    $region8: #{tpu_custom_call.1} parent=1 // loop_exit
      _
    %457 = vsyncpa [#allocation3], 1
    %s458 = scalar_lea.sflag [#allocation3], 1
    %459 = vsyncpa %s458, 1
    %460 = vsyncpa [#allocation6], 1
    %s461 = scalar_lea.sflag [#allocation6], 1
    %462 = vsyncpa %s461, 1
    %463 = vsyncpa [#allocation4], 1
    %s464 = scalar_lea.sflag [#allocation4], 1
    %465 = vsyncpa %s464, 1
    %466 = vsyncpa [#allocation9], 1
    %s467 = scalar_lea.sflag [#allocation9], 1
    %468 = vsyncpa %s467, 1

</llo_original>
